<compile_context>
chip_gen: v5e
topology: v5e:2x2
jax: 0.10.0
libtpu: 0.0.40
codegen_flags: <defaults>
</compile_context>

<pallas_src>
import jax
import jax.numpy as jnp
from jax.experimental import pallas as pl
from jax.experimental.pallas import tpu as pltpu

EPS = 1e-5
LEAKY_SLOPE = 1.0  # nn.LeakyReLU(True) => negative_slope = 1.0 (identity)


def _leaky_relu(v):
    return jnp.where(v >= 0, v, LEAKY_SLOPE * v)


# ---------------------------------------------------------------------------
# Kernel: one (TB, C*D) x tile + one (TB, d_cond) cond tile -> (TB, n_c).
# ---------------------------------------------------------------------------
def cmfmlp_kernel(xf_ref, cond_ref, wx_ref, wc_ref, b_ref, out_ref):
    acc = jnp.dot(xf_ref[...], wx_ref[...], preferred_element_type=jnp.float32)
    acc = acc + jnp.dot(cond_ref[...], wc_ref[...],
                        preferred_element_type=jnp.float32)
    out_ref[...] = (acc + b_ref[...]).astype(out_ref.dtype)


# ---------------------------------------------------------------------------
# Host-side parameter folding (exact: every layer is affine in eval mode and
# the activation slope is 1.0).
# ---------------------------------------------------------------------------
def fold_params(p, c_in, d_in):
    # seq1: Linear(d_in,5) -> Linear(5,10) -> LeakyReLU(1.0) -> Dropout -> BN(10)
    w12 = p["w1"] @ p["w2"]                        # (d_in, 10)
    b12 = p["b1"] @ p["w2"] + p["b2"]              # (1, 10)
    s1 = p["g1"] * jax.lax.rsqrt(p["v1"] + EPS)    # (1, 10)
    t1 = p["be1"] - p["m1"] * s1
    w12 = w12 * s1                                 # BN1 folded into the linear
    b12 = b12 * s1 + t1

    # seq2: Linear(c*10+d_cond,20) -> LeakyReLU(1.0) -> Dropout -> BN(20) -> Linear(20,n_c)
    w3l = p["w3"][: c_in * 10]                     # (c*10, 20)  latent part
    w3c = p["w3"][c_in * 10:]                      # (d_cond, 20) cond part
    s2 = p["g2"] * jax.lax.rsqrt(p["v2"] + EPS)    # (1, 20)
    t2 = p["be2"] - p["m2"] * s2
    w3l = w3l * s2                                 # BN2 folded into w3 / b3
    w3c = w3c * s2
    b3 = p["b3"] * s2 + t2                         # (1, 20)

    # Per-channel shared seq1 -> block-structured map from (C*d_in) to 20.
    w3l_r = w3l.reshape(c_in, 10, -1)              # (C, 10, 20)
    wx_h2 = jnp.einsum("dj,cjk->cdk", w12, w3l_r).reshape(c_in * d_in, -1)
    b_h2 = b12 @ w3l_r.sum(axis=0) + b3            # (1, 20)

    # Fold the final Linear(20, n_c).
    w_x = wx_h2 @ p["w4"]                          # (C*d_in, n_c)
    w_c = w3c @ p["w4"]                            # (d_cond, n_c)
    b_eff = b_h2 @ p["w4"] + p["b4"]               # (1, n_c)
    return w_x, w_c, b_eff


def _round_up(n, m):
    return ((n + m - 1) // m) * m


def cmfmlp_forward(x, cond, p, *, tb=1024):
    B, C, D = x.shape
    d_cond = cond.shape[1]
    n_c = p["w4"].shape[1]

    w_x, w_c, b_eff = fold_params(p, C, D)

    x_flat = x.reshape(B, C * D)                   # 2-D, lane dim = C*D
    tb = min(tb, _round_up(B, 8))                  # batch tile (multiple of 8)
    bp = _round_up(B, tb)
    if bp != B:
        x_flat = jnp.pad(x_flat, ((0, bp - B), (0, 0)))
        cond = jnp.pad(cond, ((0, bp - B), (0, 0)))

    out = pl.pallas_call(
        cmfmlp_kernel,
        out_shape=jax.ShapeDtypeStruct((bp, n_c), jnp.float32),
        grid=(bp // tb,),
        in_specs=[
            pl.BlockSpec((tb, C * D), lambda i: (i, 0)),     # activations: tiled
            pl.BlockSpec((tb, d_cond), lambda i: (i, 0)),
            pl.BlockSpec((C * D, n_c), lambda i: (0, 0)),    # weights: resident
            pl.BlockSpec((d_cond, n_c), lambda i: (0, 0)),
            pl.BlockSpec((1, n_c), lambda i: (0, 0)),
        ],
        out_specs=pl.BlockSpec((tb, n_c), lambda i: (i, 0)),
        compiler_params=pltpu.CompilerParams(
            dimension_semantics=("parallel",)),
    )(x_flat, cond, w_x, w_c, b_eff)
    return out[:B]


# ---------------------------------------------------------------------------
# Deterministic synthetic parameters with the shapes implied by __init__.
# ---------------------------------------------------------------------------
def init_params(key, d_cond, d_in, c_in, n_c):
    ks = jax.random.split(key, 8)

    def lin(k, fin, fout):
        w = jax.random.normal(k, (fin, fout), jnp.float32) * (1.0 / jnp.sqrt(fin))
        b = jnp.linspace(-0.1, 0.1, fout, dtype=jnp.float32).reshape(1, fout)
        return w, b

    w1, b1 = lin(ks[0], d_in, 5)
    w2, b2 = lin(ks[1], 5, 10)
    w3, b3 = lin(ks[2], c_in * 10 + d_cond, 20)
    w4, b4 = lin(ks[3], 20, n_c)

    def bn(k, n):
        gamma = 1.0 + 0.05 * jax.random.normal(k, (1, n), jnp.float32)
        beta = jnp.linspace(-0.05, 0.05, n, dtype=jnp.float32).reshape(1, n)
        mean = 0.1 * jax.random.normal(jax.random.fold_in(k, 1), (1, n), jnp.float32)
        var = 1.0 + 0.1 * jax.random.uniform(jax.random.fold_in(k, 2), (1, n), jnp.float32)
        return gamma, beta, mean, var

    g1, be1, m1, v1 = bn(ks[4], 10)
    g2, be2, m2, v2 = bn(ks[5], 20)

    return dict(w1=w1, b1=b1, w2=w2, b2=b2,
                g1=g1, be1=be1, m1=m1, v1=v1,
                w3=w3, b3=b3,
                g2=g2, be2=be2, m2=m2, v2=v2,
                w4=w4, b4=b4)


# ---------------------------------------------------------------------------
# Pure-JAX reference mirroring the PyTorch forward (eval mode), unfused.
# ---------------------------------------------------------------------------
def cmfmlp_reference(x, cond, p):
    B, C, D = x.shape
    bn1_scale = p["g1"] * jax.lax.rsqrt(p["v1"] + EPS)
    bn1_shift = p["be1"] - p["m1"] * bn1_scale
    parts = []
    for i in range(C):
        h = x[:, i, :] @ p["w1"] + p["b1"]
        h = h @ p["w2"] + p["b2"]
        h = _leaky_relu(h)
        # Dropout: identity at inference.
        h = h * bn1_scale + bn1_shift
        parts.append(h)
    latent = jnp.concatenate(parts, axis=1)
    feat = jnp.concatenate([latent, cond], axis=1)
    h2 = feat @ p["w3"] + p["b3"]
    h2 = _leaky_relu(h2)
    bn2_scale = p["g2"] * jax.lax.rsqrt(p["v2"] + EPS)
    bn2_shift = p["be2"] - p["m2"] * bn2_scale
    h2 = h2 * bn2_scale + bn2_shift
    return h2 @ p["w4"] + p["b4"]


if __name__ == "__main__":
    # TODO(synk): training-mode Dropout (stochastic masking) is not implemented;
    # the kernel realizes the eval/inference forward (dropout == identity).
    d_cond, d_in, c_in, n_c = 6, 16, 4, 3
    B = 8

    key = jax.random.PRNGKey(0)
    kx, kc, kp = jax.random.split(key, 3)
    x = jax.random.normal(kx, (B, c_in, d_in), jnp.float32)
    cond = jax.random.normal(kc, (B, d_cond), jnp.float32)
    params = init_params(kp, d_cond, d_in, c_in, n_c)

    out = cmfmlp_forward(x, cond, params)
    out = jax.block_until_ready(out)

    ref = cmfmlp_reference(x, cond, params)
    assert out.shape == (B, n_c)
    assert jnp.allclose(out, ref, rtol=1e-4, atol=1e-4), "kernel/reference mismatch"

    print("KERNEL_OK")
</pallas_src>

<mosaic_0001>
module attributes {stable_mosaic.version = 11 : i64} {
  func.func @cmfmlp_kernel(%arg0: i32, %arg1: memref<8x64xf32, #tpu.memory_space<vmem>>, %arg2: memref<8x6xf32, #tpu.memory_space<vmem>>, %arg3: memref<64x3xf32, #tpu.memory_space<vmem>>, %arg4: memref<6x3xf32, #tpu.memory_space<vmem>>, %arg5: memref<1x3xf32, #tpu.memory_space<vmem>>, %arg6: memref<8x3xf32, #tpu.memory_space<vmem>>) attributes {dimension_semantics = [#tpu.dimension_semantics<parallel>], iteration_bounds = array<i64: 1>, scalar_prefetch = 0 : i64, scratch_operands = 0 : i64, tpu.core_type = #tpu.core_type<tc>, window_params = [{transform_indices = @transform_0, window_bounds = array<i64: 8, 64>}, {transform_indices = @transform_1, window_bounds = array<i64: 8, 6>}, {pipeline_mode = #tpu.pipeline_mode<synchronous>, transform_indices = @transform_2, window_bounds = array<i64: 64, 3>}, {pipeline_mode = #tpu.pipeline_mode<synchronous>, transform_indices = @transform_3, window_bounds = array<i64: 6, 3>}, {pipeline_mode = #tpu.pipeline_mode<synchronous>, transform_indices = @transform_4, window_bounds = array<i64: 1, 3>}, {transform_indices = @transform_5, window_bounds = array<i64: 8, 3>}]} {
    %c0 = arith.constant 0 : index
    %c0_0 = arith.constant 0 : index
    %0 = vector.load %arg1[%c0, %c0_0] : memref<8x64xf32, #tpu.memory_space<vmem>>, vector<8x64xf32>
    %c0_1 = arith.constant 0 : index
    %c0_2 = arith.constant 0 : index
    %1 = vector.load %arg3[%c0_1, %c0_2] : memref<64x3xf32, #tpu.memory_space<vmem>>, vector<64x3xf32>
    %cst = arith.constant dense<0.000000e+00> : vector<8x3xf32>
    %2 = tpu.matmul %0, %1, %cst {dimension_numbers = #tpu.dot_dimension_numbers<[1], [0], [0], [1], [0, 0, 1, 1], [], []>} : vector<8x64xf32>, vector<64x3xf32>, vector<8x3xf32> -> vector<8x3xf32>
    %c0_3 = arith.constant 0 : index
    %c0_4 = arith.constant 0 : index
    %3 = vector.load %arg2[%c0_3, %c0_4] : memref<8x6xf32, #tpu.memory_space<vmem>>, vector<8x6xf32>
    %c0_5 = arith.constant 0 : index
    %c0_6 = arith.constant 0 : index
    %4 = vector.load %arg4[%c0_5, %c0_6] : memref<6x3xf32, #tpu.memory_space<vmem>>, vector<6x3xf32>
    %cst_7 = arith.constant dense<0.000000e+00> : vector<8x3xf32>
    %5 = tpu.matmul %3, %4, %cst_7 {dimension_numbers = #tpu.dot_dimension_numbers<[1], [0], [0], [1], [0, 0, 1, 1], [], []>} : vector<8x6xf32>, vector<6x3xf32>, vector<8x3xf32> -> vector<8x3xf32>
    %6 = arith.addf %2, %5 : vector<8x3xf32>
    %c0_8 = arith.constant 0 : index
    %c0_9 = arith.constant 0 : index
    %7 = vector.load %arg5[%c0_8, %c0_9] : memref<1x3xf32, #tpu.memory_space<vmem>>, vector<1x3xf32>
    %8 = vector.broadcast %7 : vector<1x3xf32> to vector<8x3xf32>
    %9 = arith.addf %6, %8 : vector<8x3xf32>
    %c0_10 = arith.constant 0 : index
    %c0_11 = arith.constant 0 : index
    %10 = vector.load %arg6[%c0_10, %c0_11] : memref<8x3xf32, #tpu.memory_space<vmem>>, vector<8x3xf32>
    tpu.vector_store %arg6[%c0_10, %c0_11], %9 {strides = array<i32>} : memref<8x3xf32, #tpu.memory_space<vmem>>, vector<8x3xf32>,
    return
  }
  func.func @transform_0(%arg0: i32) -> (i32, i32) {
    %c0_i32 = arith.constant 0 : i32
    %c0_i32_0 = arith.constant 0 : i32
    return %arg0, %c0_i32 : i32, i32
  }
  func.func @transform_1(%arg0: i32) -> (i32, i32) {
    %c0_i32 = arith.constant 0 : i32
    %c0_i32_0 = arith.constant 0 : i32
    return %arg0, %c0_i32 : i32, i32
  }
  func.func @transform_2(%arg0: i32) -> (i32, i32) {
    %c0_i32 = arith.constant 0 : i32
    %c0_i32_0 = arith.constant 0 : i32
    %c0_i32_1 = arith.constant 0 : i32
    return %c0_i32, %c0_i32_0 : i32, i32
  }
  func.func @transform_3(%arg0: i32) -> (i32, i32) {
    %c0_i32 = arith.constant 0 : i32
    %c0_i32_0 = arith.constant 0 : i32
    %c0_i32_1 = arith.constant 0 : i32
    return %c0_i32, %c0_i32_0 : i32, i32
  }
  func.func @transform_4(%arg0: i32) -> (i32, i32) {
    %c0_i32 = arith.constant 0 : i32
    %c0_i32_0 = arith.constant 0 : i32
    %c0_i32_1 = arith.constant 0 : i32
    return %c0_i32, %c0_i32_0 : i32, i32
  }
  func.func @transform_5(%arg0: i32) -> (i32, i32) {
    %c0_i32 = arith.constant 0 : i32
    %c0_i32_0 = arith.constant 0 : i32
    return %arg0, %c0_i32 : i32, i32
  }
}

</mosaic_0001>

<llo_original>
// kernel: tpu_custom_call.1
$region0: #{tpu_custom_call.1}
  #allocation0 [shape = 'u32[]', space=smem, size = 0x4, offset = 0x4, fixed_abs, tag = 'smem constant byte address 0x4 - core index']
  #allocation1 [shape = 'u32[72,128]{1,0:T(1,128)}', space=vmem, size = 0x9000, scoped, tag = 'internal scratch']
  %s0 = inlined_call_operand.vmem [shape: f32[8,64], index: 0, kind: input, shape index: {}]
  %s1 = inlined_call_operand.vmem [shape: f32[8,6], index: 1, kind: input, shape index: {}]
  %s2 = inlined_call_operand.vmem [shape: f32[64,3], index: 2, kind: input, shape index: {}]
  %s3 = inlined_call_operand.vmem [shape: f32[6,3], index: 3, kind: input, shape index: {}]
  %s4 = inlined_call_operand.vmem [shape: f32[1,3], index: 4, kind: input, shape index: {}]
  %s5 = inlined_call_operand.vmem [shape: f32[8,3], index: 5, kind: output, shape index: {}]
  %s6 = sld [smem:[#allocation0]]
  $region30: #{tpu_custom_call.1} parent=0
    _
  %s8 = ssub.s32 1, %s6
  %s9 = scalar_select 0, %s8, %s6
  // Predicated region
  $region2: #{tpu_custom_call.1} parent=0 // pred_check
    _
  $region3: #{tpu_custom_call.1} parent=0 // pred_check_branch
    %11 = sbr.rel (0) target = $region5
  $region4: #{tpu_custom_call.1} parent=0 // pred_region
    _
  $region5: #{tpu_custom_call.1} parent=0 // pred_fallthru
    _
  // Predicated region
  $region6: #{tpu_custom_call.1} parent=0 // pred_check
    _
  $region7: #{tpu_custom_call.1} parent=0 // pred_check_branch
    %13 = sbr.rel (0) target = $region9
  $region8: #{tpu_custom_call.1} parent=0 // pred_region
    _
  $region9: #{tpu_custom_call.1} parent=0 // pred_fallthru
    _
  // Predicated region
  $region10: #{tpu_custom_call.1} parent=0 // pred_check
    _
  $region11: #{tpu_custom_call.1} parent=0 // pred_check_branch
    %15 = sbr.rel (0) target = $region13
  $region12: #{tpu_custom_call.1} parent=0 // pred_region
    _
  $region13: #{tpu_custom_call.1} parent=0 // pred_fallthru
    _
  // Predicated region
  $region14: #{tpu_custom_call.1} parent=0 // pred_check
    _
  $region15: #{tpu_custom_call.1} parent=0 // pred_check_branch
    %17 = sbr.rel (0) target = $region17
  $region16: #{tpu_custom_call.1} parent=0 // pred_region
    _
  $region17: #{tpu_custom_call.1} parent=0 // pred_fallthru
    _
  // Predicated region
  $region18: #{tpu_custom_call.1} parent=0 // pred_check
    _
  $region19: #{tpu_custom_call.1} parent=0 // pred_check_branch
    %19 = sbr.rel (0) target = $region21
  $region20: #{tpu_custom_call.1} parent=0 // pred_region
    _
  $region21: #{tpu_custom_call.1} parent=0 // pred_fallthru
    _
  %v20 = vld [vmem:[%s0] sm:$0xff]
  %v21 = vld [vmem:[%s2] sm:$0xff]
  %v22 = vld [vmem:[%s2 + $0x8] sm:$0xff]
  %v23 = vld [vmem:[%s2 + $0x10] sm:$0xff]
  %v24 = vld [vmem:[%s2 + $0x18] sm:$0xff]
  %v25 = vld [vmem:[%s2 + $0x20] sm:$0xff]
  %v26 = vld [vmem:[%s2 + $0x28] sm:$0xff]
  %v27 = vld [vmem:[%s2 + $0x30] sm:$0xff]
  %v28 = vld [vmem:[%s2 + $0x38] sm:$0xff]
  %v29 = vld [vmem:[%s1] sm:$0xff]
  %v30 = vld [vmem:[%s3] sm:$0x3f]
  %vm31 = vcmask 48128
  %v33 = vsel %vm31, %v29, 0
  %vm35 = vcmask 1045504
  %v37 = vsel %vm35, %v30, 0
  %39 = vmatpush.msra.mxu0 0.0
  %40 = vmatpush.msra.mxu0 0.0
  %41 = vmatpush.msra.mxu0 0.0
  %42 = vmatpush.msra.mxu0 0.0
  %43 = vmatpush.msra.mxu0 0.0
  %44 = vmatpush.msra.mxu0 0.0
  %45 = vmatpush.msra.mxu0 0.0
  %46 = vmatpush.msra.mxu0 0.0
  %47 = vmatpush.msra.mxu0 0.0
  %48 = vmatpush.msra.mxu0 0.0
  %49 = vmatpush.msra.mxu0 0.0
  %50 = vmatpush.msra.mxu0 0.0
  %51 = vmatpush.msra.mxu0 0.0
  %52 = vmatpush.msra.mxu0 0.0
  %53 = vmatpush.msra.mxu0 0.0
  %54 = vmatpush.msra.mxu0 %v37
  %55 = vmatmul.f32.gmra.mxu0 %v33
  %v56 = vpop.f32.mrf.mxu0
  %v57 = vadd.f32 0.0, %v56
  %58 = vdwg.mxu0
  %vm59 = vcmask 523264
  %v61 = vsel %vm59, %v20, 0
  %63 = vmatpush.msra.mxu0 0.0
  %64 = vmatpush.msra.mxu0 0.0
  %65 = vmatpush.msra.mxu0 0.0
  %66 = vmatpush.msra.mxu0 0.0
  %67 = vmatpush.msra.mxu0 0.0
  %68 = vmatpush.msra.mxu0 0.0
  %69 = vmatpush.msra.mxu0 0.0
  %70 = vmatpush.msra.mxu0 0.0
  %71 = vmatpush.msra.mxu0 %v28
  %72 = vmatpush.msra.mxu0 %v27
  %73 = vmatpush.msra.mxu0 %v26
  %74 = vmatpush.msra.mxu0 %v25
  %75 = vmatpush.msra.mxu0 %v24
  %76 = vmatpush.msra.mxu0 %v23
  %77 = vmatpush.msra.mxu0 %v22
  %78 = vmatpush.msra.mxu0 %v21
  %79 = vmatmul.f32.gmra.mxu0 %v61
  %v80 = vpop.f32.mrf.mxu0
  %v81 = vadd.f32 %v57, %v80
  %82 = vdwg.mxu0
  %v83 = vld [vmem:[%s4] sm:$0x1]
  %v85 = vperm.slane %v83, 0
  %v87 = vadd.f32 %v81, %v85
  %vm88 = vcmask 23552
  %89 = vst.msk [vmem:[%s5] sm:$0xff] %vm88, %v87
  // Predicated region
  $region22: #{tpu_custom_call.1} parent=0 // pred_check
    _
  $region23: #{tpu_custom_call.1} parent=0 // pred_check_branch
    %91 = sbr.rel (0) target = $region25
  $region24: #{tpu_custom_call.1} parent=0 // pred_region
    _
  $region25: #{tpu_custom_call.1} parent=0 // pred_fallthru
    _
  // Predicated region
  $region26: #{tpu_custom_call.1} parent=0 // pred_check
    _
  $region27: #{tpu_custom_call.1} parent=0 // pred_check_branch
    %93 = sbr.rel (0) target = $region29
  $region28: #{tpu_custom_call.1} parent=0 // pred_region
    _
  $region29: #{tpu_custom_call.1} parent=0 // pred_fallthru
    _

</llo_original>
